<compile_context>
chip_gen: v7x
topology: tpu7x:2x2x1
jax: 0.10.0
libtpu: 0.0.40
codegen_flags: <defaults>
</compile_context>

<pallas_src>
import functools

import jax
import jax.numpy as jnp
from jax.experimental import pallas as pl
from jax.experimental.pallas import tpu as pltpu


# Hard-coded class weights from the PyTorch module's __init__ (19 classes).
CLASS_WEIGHTS = jnp.array(
    [0.8373, 0.918, 0.866, 1.0345, 1.0166, 0.9969, 0.9754, 1.0489, 0.8786,
     1.0023, 0.9539, 0.9843, 1.1116, 0.9037, 1.0865, 1.0955, 1.0865, 1.1529,
     1.0507],
    dtype=jnp.float32,
)

_INVALID_PROB = 2.0          # sentinel > 1.0: marks ignored / padded pixels
_ONE_F32_BITS = 0x3F800000   # float32 bit pattern of 1.0


def _pixel_ce_kernel(score_ref, target_ref, weight_ref, out_ref, *, ignore_label):
    """Per-pixel weighted CE loss + target-class softmax prob (lane-dense).

    Blocks: score (1, C, T), target (1, 1, T), weight (1, C, 1),
    out (1, 2, T) with out[:,0,:]=loss, out[:,1,:]=prob (sentinel if ignored).
    """
    s = score_ref[...].astype(jnp.float32)          # accepts bf16 logits; f32 math
    t = target_ref[...]                             # (1, 1, T) int32
    w = weight_ref[...]                             # (1, C, 1) f32

    valid = t != ignore_label                       # (1, 1, T)
    tc = jnp.where(valid, t, 0)

    # Numerically stable log-sum-exp over the class (sublane, axis=-2) axis.
    m = jnp.max(s, axis=1, keepdims=True)                               # (1,1,T)
    e = jnp.exp(s - m)                                                  # (1,C,T)
    lse = jnp.log(jnp.sum(e, axis=1, keepdims=True)) + m                # (1,1,T)

    cls = jax.lax.broadcasted_iota(jnp.int32, s.shape, 1)               # (1,C,T)
    onehot = cls == tc                                                  # (1,C,T)

    # Select-reduce (no full-slab multiplies) for score[target] / weight[target].
    s_t = jnp.sum(jnp.where(onehot, s, 0.0), axis=1, keepdims=True)     # (1,1,T)
    w_t = jnp.sum(jnp.where(onehot, w, 0.0), axis=1, keepdims=True)     # (1,1,T)

    logp_t = s_t - lse
    validf = valid.astype(jnp.float32)
    loss = validf * (-w_t * logp_t)                 # 0 for ignored pixels
    prob = jnp.where(valid, jnp.exp(logp_t), _INVALID_PROB)

    out_ref[:, 0:1, :] = loss
    out_ref[:, 1:2, :] = prob


def _ohem_reduce_kernel(lp_ref, thr_ref, lsum_ref, cnt_ref, acc_loss, acc_cnt):
    """Thresholded sum of losses + kept-pixel count, one partial per image."""
    i = pl.program_id(1)

    @pl.when(i == 0)
    def _():
        acc_loss[...] = jnp.zeros_like(acc_loss)
        acc_cnt[...] = jnp.zeros_like(acc_cnt)

    thr = thr_ref[0]                                # scalar threshold from SMEM
    loss = lp_ref[:, 0:1, :]                        # (1, 1, T)
    prob = lp_ref[:, 1:2, :]                        # (1, 1, T); sentinel excludes invalid
    keep = (prob < thr).astype(jnp.float32)         # strict '<' as in the module
    acc_loss[...] += loss * keep                    # lane-wide VPU accumulation
    acc_cnt[...] += keep

    @pl.when(i == pl.num_programs(1) - 1)
    def _():                                        # single cross-lane collapse
        lsum_ref[...] = jnp.sum(acc_loss[...], axis=2, keepdims=True)
        cnt_ref[...] = jnp.sum(acc_cnt[...], axis=2, keepdims=True)


def _kth_smallest_valid_prob(prob, k):
    """Exact k-th smallest (0-indexed) prob among valid pixels (prob <= 1.0).

    Streaming bit-bisection over the float32 bit pattern: 31 cheap masked-count
    passes instead of an O(P log P) sort, while staying bit-exact (the review's
    approximate histogram would change which pixels are kept).  Invalid/padded
    pixels carry the _INVALID_PROB sentinel (> 1.0) and are never counted.
    """
    bits = jax.lax.bitcast_convert_type(prob, jnp.int32)  # order-preserving (x >= 0)

    def body(_, carry):
        lo, hi = carry
        mid = (lo + hi) // 2
        cnt = jnp.sum(bits <= mid, dtype=jnp.int32)
        go_left = cnt >= k + 1
        return (jnp.where(go_left, lo, mid + 1), jnp.where(go_left, mid, hi))

    _, hi = jax.lax.fori_loop(0, 31, body,
                              (jnp.int32(0), jnp.int32(_ONE_F32_BITS)))
    return jax.lax.bitcast_convert_type(hi, jnp.float32)


def ohem_cross_entropy_2d(score, target, *, ignore_label=-1, thresh=0.7,
                          min_kept=100000, class_weights=CLASS_WEIGHTS,
                          tile_pixels=2048):
    n, c, ph, pw = score.shape
    _, h, w = target.shape
    if (ph, pw) != (h, w):
        # TODO(synk): bilinear upsample (F.upsample) path not implemented.
        raise NotImplementedError("score and target spatial sizes must match")
    if class_weights.shape[0] != c:
        raise ValueError("class_weights length must equal the number of classes")

    hw = h * w
    tile_pixels = max(128, (int(tile_pixels) // 128) * 128)
    tile = min(tile_pixels, pl.cdiv(hw, 128) * 128)        # lane-dense tile
    hw_pad = pl.cdiv(hw, tile) * tile

    # Free reshapes only -- no NCHW transpose.  Classes -> sublanes, pixels -> lanes.
    s3 = score.reshape(n, c, hw)                           # keep dtype (bf16 OK; cast in kernel)
    t3 = target.reshape(n, 1, hw).astype(jnp.int32)
    if hw_pad != hw:                                       # pad tail with ignored pixels
        s3 = jnp.pad(s3, ((0, 0), (0, 0), (0, hw_pad - hw)))
        t3 = jnp.pad(t3, ((0, 0), (0, 0), (0, hw_pad - hw)),
                     constant_values=ignore_label)

    wcol = class_weights.reshape(1, c, 1).astype(jnp.float32)
    grid = (n, hw_pad // tile)

    # Kernel 1: packed, lane-dense per-pixel [loss ; prob] slab.
    lp = pl.pallas_call(
        functools.partial(_pixel_ce_kernel, ignore_label=ignore_label),
        out_shape=jax.ShapeDtypeStruct((n, 2, hw_pad), jnp.float32),
        grid_spec=pltpu.PrefetchScalarGridSpec(
            num_scalar_prefetch=0,
            grid=grid,
            in_specs=[
                pl.BlockSpec((1, c, tile), lambda b, i: (b, 0, i)),
                pl.BlockSpec((1, 1, tile), lambda b, i: (b, 0, i)),
                pl.BlockSpec((1, c, 1), lambda b, i: (0, 0, 0)),
            ],
            out_specs=pl.BlockSpec((1, 2, tile), lambda b, i: (b, 0, i)),
        ),
        compiler_params=pltpu.CompilerParams(
            dimension_semantics=("parallel", "parallel")),
    )(s3, t3, wcol)

    # OHEM threshold = max(k-th smallest valid prob, thresh), k = min(min_kept, n_valid-1).
    n_valid = jnp.sum(target != ignore_label).astype(jnp.int32)
    k = jnp.maximum(jnp.minimum(jnp.int32(min_kept), n_valid - 1), 0)
    kth = _kth_smallest_valid_prob(lp[:, 1, :].reshape(-1), k)
    threshold = jnp.maximum(kth, jnp.float32(thresh)).reshape(1)

    # Kernel 2: thresholded reduction.  Batch axis is "parallel" (per-image
    # partials, so v7x's two TensorCores can split it); final sum in JAX.
    loss_part, cnt_part = pl.pallas_call(
        _ohem_reduce_kernel,
        out_shape=[jax.ShapeDtypeStruct((n, 1, 1), jnp.float32)] * 2,
        grid_spec=pltpu.PrefetchScalarGridSpec(
            num_scalar_prefetch=0,
            grid=grid,
            in_specs=[
                pl.BlockSpec((1, 2, tile), lambda b, i: (b, 0, i)),
                pl.BlockSpec(memory_space=pltpu.MemorySpace.SMEM),  # scalar threshold
            ],
            out_specs=[pl.BlockSpec((1, 1, 1), lambda b, i: (b, 0, 0))] * 2,
            scratch_shapes=[pltpu.VMEM((1, 1, tile), jnp.float32)] * 2,
        ),
        compiler_params=pltpu.CompilerParams(
            dimension_semantics=("parallel", "arbitrary")),
    )(lp, threshold)

    # TODO(synk): PyTorch's fallback branch for <=1 valid pixel (mean over the
    # unfiltered flattened losses) is not reproduced; with 0 kept pixels this
    # divides by zero, matching torch.mean of an empty tensor (NaN).
    return jnp.sum(loss_part) / jnp.sum(cnt_part)


def _reference(score, target, *, ignore_label=-1, thresh=0.7, min_kept=100000,
               class_weights=CLASS_WEIGHTS):
    """Pure-JAX reference matching the PyTorch forward (main branch)."""
    n, c, h, w = score.shape
    s = jnp.transpose(score, (0, 2, 3, 1)).reshape(-1, c).astype(jnp.float32)
    t = target.reshape(-1)
    valid = t != ignore_label
    tc = jnp.where(valid, t, 0)
    logp = jax.nn.log_softmax(s, axis=-1)
    logp_t = jnp.take_along_axis(logp, tc[:, None], axis=1)[:, 0]
    loss = jnp.where(valid, -class_weights[tc] * logp_t, 0.0)
    prob = jnp.exp(logp_t)
    n_valid = jnp.sum(valid)
    prob_sorted = jnp.sort(jnp.where(valid, prob, jnp.inf))
    k = jnp.minimum(min_kept, n_valid - 1)
    threshold = jnp.maximum(prob_sorted[k], thresh)
    keep = valid & (prob < threshold)
    return jnp.sum(jnp.where(keep, loss, 0.0)) / jnp.sum(keep)


if __name__ == "__main__":
    key = jax.random.PRNGKey(0)
    k1, k2, k3 = jax.random.split(key, 3)

    N, C, H, W = 2, 19, 16, 16            # 19 classes (length of the weight vector)
    score = jax.random.normal(k1, (N, C, H, W), dtype=jnp.float32)
    target = jax.random.randint(k2, (N, H, W), 0, C, dtype=jnp.int32)
    ignore = jax.random.uniform(k3, (N, H, W)) < 0.1
    target = jnp.where(ignore, -1, target)    # sprinkle some ignore_label pixels

    out = ohem_cross_entropy_2d(score, target)
    out = jax.block_until_ready(out)

    ref = _reference(score, target)
    assert jnp.isfinite(out), "non-finite loss"
    assert abs(float(out) - float(ref)) < 1e-4 * max(1.0, abs(float(ref))), (
        float(out), float(ref))
    print("KERNEL_OK")
</pallas_src>

<mosaic_0001>
module attributes {stable_mosaic.version = 11 : i64} {
  func.func @_pixel_ce_kernel(%arg0: i32, %arg1: i32, %arg2: memref<1x19x256xf32, #tpu.memory_space<vmem>>, %arg3: memref<1x1x256xi32, #tpu.memory_space<vmem>>, %arg4: memref<1x19x1xf32, #tpu.memory_space<vmem>>, %arg5: memref<1x2x256xf32, #tpu.memory_space<vmem>>) attributes {dimension_semantics = [#tpu.dimension_semantics<parallel>, #tpu.dimension_semantics<parallel>], iteration_bounds = array<i64: 2, 1>, scalar_prefetch = 0 : i64, scratch_operands = 0 : i64, tpu.core_type = #tpu.core_type<tc>, window_params = [{transform_indices = @transform_0, window_bounds = array<i64: 1, 19, 256>}, {transform_indices = @transform_1, window_bounds = array<i64: 1, 1, 256>}, {pipeline_mode = #tpu.pipeline_mode<synchronous>, transform_indices = @transform_2, window_bounds = array<i64: 1, 19, 1>}, {transform_indices = @transform_3, window_bounds = array<i64: 1, 2, 256>}]} {
    %c0 = arith.constant 0 : index
    %c0_0 = arith.constant 0 : index
    %c0_1 = arith.constant 0 : index
    %0 = vector.load %arg2[%c0, %c0_0, %c0_1] : memref<1x19x256xf32, #tpu.memory_space<vmem>>, vector<1x19x256xf32>
    %c0_2 = arith.constant 0 : index
    %c0_3 = arith.constant 0 : index
    %c0_4 = arith.constant 0 : index
    %1 = vector.load %arg3[%c0_2, %c0_3, %c0_4] : memref<1x1x256xi32, #tpu.memory_space<vmem>>, vector<1x1x256xi32>
    %c0_5 = arith.constant 0 : index
    %c0_6 = arith.constant 0 : index
    %c0_7 = arith.constant 0 : index
    %2 = vector.load %arg4[%c0_5, %c0_6, %c0_7] : memref<1x19x1xf32, #tpu.memory_space<vmem>>, vector<1x19x1xf32>
    %c-1_i32 = arith.constant -1 : i32
    %3 = vector.broadcast %c-1_i32 : i32 to vector<1x1x256xi32>
    %4 = arith.cmpi ne, %1, %3 : vector<1x1x256xi32>
    %c0_i32 = arith.constant 0 : i32
    %5 = vector.broadcast %c0_i32 : i32 to vector<1x1x256xi32>
    %6 = arith.select %4, %1, %5 : vector<1x1x256xi1>, vector<1x1x256xi32>
    %cst = arith.constant dense<0xFF800000> : vector<1x256xf32>
    %7 = vector.multi_reduction <maximumf>, %0, %cst [1] : vector<1x19x256xf32> to vector<1x256xf32>
    %8 = vector.shape_cast %7 : vector<1x256xf32> to vector<1x1x256xf32>
    %9 = vector.broadcast %8 : vector<1x1x256xf32> to vector<1x19x256xf32>
    %10 = arith.subf %0, %9 : vector<1x19x256xf32>
    %11 = math.exp %10 : vector<1x19x256xf32>
    %cst_8 = arith.constant dense<0.000000e+00> : vector<1x256xf32>
    %12 = vector.multi_reduction <add>, %11, %cst_8 [1] : vector<1x19x256xf32> to vector<1x256xf32>
    %13 = vector.shape_cast %12 : vector<1x256xf32> to vector<1x1x256xf32>
    %14 = math.log %13 : vector<1x1x256xf32>
    %15 = arith.addf %14, %8 : vector<1x1x256xf32>
    %16 = tpu.iota {dimensions = array<i32: 1>} : vector<1x19x256xi32>
    %17 = vector.broadcast %6 : vector<1x1x256xi32> to vector<1x19x256xi32>
    %18 = arith.cmpi eq, %16, %17 : vector<1x19x256xi32>
    %cst_9 = arith.constant 0.000000e+00 : f32
    %19 = vector.broadcast %cst_9 : f32 to vector<1x19x256xf32>
    %20 = arith.select %18, %0, %19 : vector<1x19x256xi1>, vector<1x19x256xf32>
    %cst_10 = arith.constant dense<0.000000e+00> : vector<1x256xf32>
    %21 = vector.multi_reduction <add>, %20, %cst_10 [1] : vector<1x19x256xf32> to vector<1x256xf32>
    %22 = vector.shape_cast %21 : vector<1x256xf32> to vector<1x1x256xf32>
    %cst_11 = arith.constant 0.000000e+00 : f32
    %23 = vector.shape_cast %2 : vector<1x19x1xf32> to vector<1x19x1xf32>
    %24 = vector.broadcast %23 : vector<1x19x1xf32> to vector<1x19x256xf32>
    %25 = vector.broadcast %cst_11 : f32 to vector<1x19x256xf32>
    %26 = arith.select %18, %24, %25 : vector<1x19x256xi1>, vector<1x19x256xf32>
    %cst_12 = arith.constant dense<0.000000e+00> : vector<1x256xf32>
    %27 = vector.multi_reduction <add>, %26, %cst_12 [1] : vector<1x19x256xf32> to vector<1x256xf32>
    %28 = vector.shape_cast %27 : vector<1x256xf32> to vector<1x1x256xf32>
    %29 = arith.subf %22, %15 : vector<1x1x256xf32>
    %30 = arith.extui %4 : vector<1x1x256xi1> to vector<1x1x256xi32>
    %31 = arith.sitofp %30 : vector<1x1x256xi32> to vector<1x1x256xf32>
    %cst_13 = arith.constant 0.000000e+00 : f32
    %32 = vector.broadcast %cst_13 : f32 to vector<1x1x256xf32>
    %33 = arith.subf %32, %28 : vector<1x1x256xf32>
    %34 = arith.mulf %33, %29 : vector<1x1x256xf32>
    %35 = arith.mulf %31, %34 : vector<1x1x256xf32>
    %36 = math.exp %29 : vector<1x1x256xf32>
    %cst_14 = arith.constant 2.000000e+00 : f32
    %37 = vector.broadcast %cst_14 : f32 to vector<1x1x256xf32>
    %38 = arith.select %4, %36, %37 : vector<1x1x256xi1>, vector<1x1x256xf32>
    %c0_15 = arith.constant 0 : index
    %c0_16 = arith.constant 0 : index
    %c0_17 = arith.constant 0 : index
    %39 = vector.load %arg5[%c0_15, %c0_16, %c0_17] : memref<1x2x256xf32, #tpu.memory_space<vmem>>, vector<1x1x256xf32>
    tpu.vector_store %arg5[%c0_15, %c0_16, %c0_17], %35 {strides = array<i32>} : memref<1x2x256xf32, #tpu.memory_space<vmem>>, vector<1x1x256xf32>,
    %c0_18 = arith.constant 0 : index
    %c1 = arith.constant 1 : index
    %c0_19 = arith.constant 0 : index
    %40 = vector.load %arg5[%c0_18, %c1, %c0_19] : memref<1x2x256xf32, #tpu.memory_space<vmem>>, vector<1x1x256xf32>
    tpu.vector_store %arg5[%c0_18, %c1, %c0_19], %38 {strides = array<i32>} : memref<1x2x256xf32, #tpu.memory_space<vmem>>, vector<1x1x256xf32>,
    return
  }
  func.func @transform_0(%arg0: i32, %arg1: i32) -> (i32, i32, i32) {
    %c0_i32 = arith.constant 0 : i32
    %c0_i32_0 = arith.constant 0 : i32
    return %arg0, %c0_i32, %arg1 : i32, i32, i32
  }
  func.func @transform_1(%arg0: i32, %arg1: i32) -> (i32, i32, i32) {
    %c0_i32 = arith.constant 0 : i32
    %c0_i32_0 = arith.constant 0 : i32
    return %arg0, %c0_i32, %arg1 : i32, i32, i32
  }
  func.func @transform_2(%arg0: i32, %arg1: i32) -> (i32, i32, i32) {
    %c0_i32 = arith.constant 0 : i32
    %c0_i32_0 = arith.constant 0 : i32
    %c0_i32_1 = arith.constant 0 : i32
    %c0_i32_2 = arith.constant 0 : i32
    return %c0_i32, %c0_i32_0, %c0_i32_1 : i32, i32, i32
  }
  func.func @transform_3(%arg0: i32, %arg1: i32) -> (i32, i32, i32) {
    %c0_i32 = arith.constant 0 : i32
    %c0_i32_0 = arith.constant 0 : i32
    return %arg0, %c0_i32, %arg1 : i32, i32, i32
  }
}

</mosaic_0001>

<llo_original>
// kernel: tpu_custom_call.1
$region0: #{tpu_custom_call.1}
  #allocation0 [shape = 'u32[]', space=smem, size = 0x4, offset = 0x4, fixed_abs, tag = 'smem constant byte address 0x4 - core index']
  #allocation1 [shape = 'u32[144,128]{1,0:T(1,128)}', space=vmem, size = 0x12000, scoped, tag = 'internal scratch']
  %s0 = inlined_call_operand.vmem [shape: f32[2,19,256], index: 0, kind: input, shape index: {}]
  %s1 = inlined_call_operand.vmem [shape: s32[2,1,256], index: 1, kind: input, shape index: {}]
  %s2 = inlined_call_operand.vmem [shape: f32[1,19,1], index: 2, kind: input, shape index: {}]
  %s3 = inlined_call_operand.hbm [shape: f32[2,2,256], index: 3, kind: output, shape index: {}]
  %s4 = sld [smem:[#allocation0]]
  $region45: #{tpu_custom_call.1} parent=0
    _
  %s6 = ssub.s32 1, %s4
  %s7 = scalar_select 0, %s6, %s4
  $region1: #{tpu_custom_call.1} parent=0
    #allocation2 [shape = 'u8[4096]{0}', space=vmem, size = 0x1000, scoped, tag = 'output window, operand 0']
    #allocation3 [shape = 's32[2]{0}', space=sflag, size = 0x8, scoped, tag = 'scoped memory for tpu_custom_call.1']
    %8 = vsyncpa [#allocation3], 0
    %s9 = scalar_lea.sflag [#allocation3], 1
    %10 = vsyncpa %s9, 0
    loop: start=0, step=1, limit=4
    $region2: #{tpu_custom_call.1} parent=1 // loop_pre_header
      _
    $region3: #{tpu_custom_call.1} parent=1 // loop_header
      %s12 = sphi 0, %s16
      %p13 = scmp.ge.s32.totalorder %s12, 4
      %s19 = sphi 0, %s31
      %s20 = sphi 0, %s27
      %s21 = sphi 0, %s19
      %s22 = sphi 0, %s20
      %s23 = sphi 0, %s21
      %s24 = sphi 0, %s22
      %s36 = sphi 0, %s38
      %s39 = sphi 0, %s36
      %s40 = sphi 0, %s39
      %s56 = sphi 0, %s40
      %s64 = sphi 0, %s66
      %s67 = sphi 0, %s64
      %s68 = sphi 0, %s67
      %s84 = sphi 0, %s68
      %s88 = sphi 0, %s88
      %s90 = sphi 0, %s88
      %s91 = sphi 0, %s90
      %s105 = sphi 0, %s91
      %s113 = sphi 0, %s115
      %s116 = sphi 0, %s113
      %s117 = sphi 0, %s116
      %s133 = sphi 0, %s117
    $region4: #{tpu_custom_call.1} parent=1 // loop_header_branch
      %15 = sbr.rel (%p13) target = $region8
    $region5: #{tpu_custom_call.1} parent=1 // loop_body
      %s17 = ssub.s32 %s12, 1
      %s18 = ssub.s32 %s12, 2
      %s25 = sadd.s32 1, %s20
      %p26 = scmp.ge.s32.totalorder %s25, 1
      %s27 = scalar_select %p26, 0, %s25
      %s28 = sadd.s32 1, %s19
      %s29 = scalar_select %p26, %s28, %s19
      %p30 = scmp.ge.s32.totalorder %s29, 2
      %s31 = scalar_select %p30, 0, %s29
      %s32 = ssub.s32 %s19, %s31
      %s33 = ssub.s32 %s20, %s27
      %s34 = sor.u32 %s32, %s33
      %p35 = scmp.eq.s32.totalorder %s34, 0
      %s37 = sadd.s32 %s36, 1
      %s38 = scalar_select %p35, %s36, %s37
      %p41 = pneg %p35
      %p42 = scmp.eq.s32.totalorder %s12, 1
      %p43 = por %p41, %p42
      %p44 = scmp.ne.s32.totalorder %s36, %s39
      %p45 = scmp.eq.s32.totalorder %s12, 0
      %p46 = por %p44, %p45
      %p47 = scmp.ne.s32.totalorder %s36, %s39
      %p48 = scmp.eq.s32.totalorder %s17, 1
      %p49 = por %p47, %p48
      %p50 = scmp.ne.s32.totalorder %s39, %s40
      %p51 = scmp.eq.s32.totalorder %s17, 0
      %p52 = por %p50, %p51
      %p53 = scmp.ne.s32.totalorder %s39, %s40
      %p54 = scmp.eq.s32.totalorder %s18, 1
      %p55 = por %p53, %p54
      %p57 = scmp.ne.s32.totalorder %s40, %s56
      %p58 = scmp.eq.s32.totalorder %s18, 0
      %p59 = por %p57, %p58
      %s60 = ssub.s32 %s19, %s31
      %s61 = ssub.s32 %s20, %s27
      %s62 = sor.u32 %s60, %s61
      %p63 = scmp.eq.s32.totalorder %s62, 0
      %s65 = sadd.s32 %s64, 1
      %s66 = scalar_select %p63, %s64, %s65
      %p69 = pneg %p63
      %p70 = scmp.eq.s32.totalorder %s12, 1
      %p71 = por %p69, %p70
      %p72 = scmp.ne.s32.totalorder %s64, %s67
      %p73 = scmp.eq.s32.totalorder %s12, 0
      %p74 = por %p72, %p73
      %p75 = scmp.ne.s32.totalorder %s64, %s67
      %p76 = scmp.eq.s32.totalorder %s17, 1
      %p77 = por %p75, %p76
      %p78 = scmp.ne.s32.totalorder %s67, %s68
      %p79 = scmp.eq.s32.totalorder %s17, 0
      %p80 = por %p78, %p79
      %p81 = scmp.ne.s32.totalorder %s67, %s68
      %p82 = scmp.eq.s32.totalorder %s18, 1
      %p83 = por %p81, %p82
      %p85 = scmp.ne.s32.totalorder %s68, %s84
      %p86 = scmp.eq.s32.totalorder %s18, 0
      %p87 = por %p85, %p86
      %s89 = sadd.s32 %s88, 1
      %p92 = scmp.eq.s32.totalorder %s12, 1
      %p93 = scmp.ne.s32.totalorder %s88, %s90
      %p94 = scmp.eq.s32.totalorder %s12, 0
      %p95 = por %p93, %p94
      %p96 = scmp.ne.s32.totalorder %s88, %s90
      %p97 = scmp.eq.s32.totalorder %s17, 1
      %p98 = por %p96, %p97
      %p99 = scmp.ne.s32.totalorder %s90, %s91
      %p100 = scmp.eq.s32.totalorder %s17, 0
      %p101 = por %p99, %p100
      %p102 = scmp.ne.s32.totalorder %s90, %s91
      %p103 = scmp.eq.s32.totalorder %s18, 1
      %p104 = por %p102, %p103
      %p106 = scmp.ne.s32.totalorder %s91, %s105
      %p107 = scmp.eq.s32.totalorder %s18, 0
      %p108 = por %p106, %p107
      %s109 = ssub.s32 %s19, %s31
      %s110 = ssub.s32 %s20, %s27
      %s111 = sor.u32 %s109, %s110
      %p112 = scmp.eq.s32.totalorder %s111, 0
      %s114 = sadd.s32 %s113, 1
      %s115 = scalar_select %p112, %s113, %s114
      %p118 = pneg %p112
      %p119 = scmp.eq.s32.totalorder %s12, 1
      %p120 = por %p118, %p119
      %p121 = scmp.ne.s32.totalorder %s113, %s116
      %p122 = scmp.eq.s32.totalorder %s12, 0
      %p123 = por %p121, %p122
      %p124 = scmp.ne.s32.totalorder %s113, %s116
      %p125 = scmp.eq.s32.totalorder %s17, 1
      %p126 = por %p124, %p125
      %p127 = scmp.ne.s32.totalorder %s116, %s117
      %p128 = scmp.eq.s32.totalorder %s17, 0
      %p129 = por %p127, %p128
      %p130 = scmp.ne.s32.totalorder %s116, %s117
      %p131 = scmp.eq.s32.totalorder %s18, 1
      %p132 = por %p130, %p131
      %p134 = scmp.ne.s32.totalorder %s117, %s133
      %p135 = scmp.eq.s32.totalorder %s18, 0
      %p136 = por %p134, %p135
      %p137 = scmp.le.s32.totalorder 1, %s12
      %p138 = scmp.lt.s32.totalorder %s12, 3
      %p139 = pnand %p137, %p138
      %p140 = pneg %p139
      // Predicated region
      $region9: #{tpu_custom_call.1} parent=5 // pred_check
        _
      $region10: #{tpu_custom_call.1} parent=5 // pred_check_branch
        %142 = sbr.rel (%p139) target = $region12
      $region11: #{tpu_custom_call.1} parent=5 // pred_region
        %s143 = ssub.s32 %s12, 1
        // Predicated region
        $region13: #{tpu_custom_call.1} parent=11 // pred_check
          %p144 = pneg %p101
        $region14: #{tpu_custom_call.1} parent=11 // pred_check_branch
          %146 = sbr.rel (%p144) target = $region16
        $region15: #{tpu_custom_call.1} parent=11 // pred_region
          _
        $region16: #{tpu_custom_call.1} parent=11 // pred_fallthru
          _
      $region12: #{tpu_custom_call.1} parent=5 // pred_fallthru
        _
      %p147 = scmp.lt.s32.totalorder %s12, 2
      // Predicated region
      $region17: #{tpu_custom_call.1} parent=5 // pred_check
        %p148 = pneg %p147
      $region18: #{tpu_custom_call.1} parent=5 // pred_check_branch
        %150 = sbr.rel (%p148) target = $region20
      $region19: #{tpu_custom_call.1} parent=5 // pred_region
        // Predicated region
        $region21: #{tpu_custom_call.1} parent=19 // pred_check
          %p151 = pneg %p46
        $region22: #{tpu_custom_call.1} parent=19 // pred_check_branch
          %153 = sbr.rel (%p151) target = $region24
        $region23: #{tpu_custom_call.1} parent=19 // pred_region
          %s154 = smul.u32 2, %s20
          %p155 = scmp.lt.s32.totalorder %s19, 1
          %s156 = scalar_select %p155, %s19, 1
          %p157 = scmp.lt.s32.totalorder %s154, 1
          %s158 = scalar_select %p157, %s154, 1
          %s159 = smul.addr %s156, 6
          %s160 = sadd.s32 %s158, %s159
          %s161 = smul.addr %s160, 8
          %s162 = scalar_lea.vmem %s0, %s161
          %s163 = smul.u32 2, %s20
        $region24: #{tpu_custom_call.1} parent=19 // pred_fallthru
          _
        // Predicated region
        $region25: #{tpu_custom_call.1} parent=19 // pred_check
          %p164 = pneg %p74
        $region26: #{tpu_custom_call.1} parent=19 // pred_check_branch
          %166 = sbr.rel (%p164) target = $region28
        $region27: #{tpu_custom_call.1} parent=19 // pred_region
          %s167 = smul.u32 2, %s20
          %p168 = scmp.lt.s32.totalorder %s19, 1
          %s169 = scalar_select %p168, %s19, 1
          %p170 = scmp.lt.s32.totalorder %s167, 1
          %s171 = scalar_select %p170, %s167, 1
          %s172 = smul.addr %s169, 2
          %s173 = sadd.s32 %s171, %s172
          %s174 = scalar_lea.vmem %s1, %s173
          %s175 = smul.u32 2, %s20
        $region28: #{tpu_custom_call.1} parent=19 // pred_fallthru
          _
      $region20: #{tpu_custom_call.1} parent=5 // pred_fallthru
        _
      %p176 = scmp.le.s32.totalorder 1, %s12
      %p177 = scmp.lt.s32.totalorder %s12, 3
      %p178 = pnand %p176, %p177
      %p179 = pneg %p178
      // Predicated region
      $region29: #{tpu_custom_call.1} parent=5 // pred_check
        _
      $region30: #{tpu_custom_call.1} parent=5 // pred_check_branch
        %181 = sbr.rel (%p178) target = $region32
      $region31: #{tpu_custom_call.1} parent=5 // pred_region
        %s182 = ssub.s32 %s12, 1
        %s183 = smul.u32 2, %s22
        %p184 = scmp.lt.s32.totalorder %s21, 1
        %s185 = scalar_select %p184, %s21, 1
        %p186 = scmp.lt.s32.totalorder %s183, 1
        %s187 = scalar_select %p186, %s183, 1
        %s188 = smul.addr %s185, 6
        %s189 = sadd.s32 %s187, %s188
        %s190 = smul.addr %s189, 8
        %s191 = scalar_lea.vmem %s0, %s190
        %p192 = pneg %p52
        %p193 = pneg %p49
        %s194 = smul.u32 2, %s22
        %p195 = scmp.lt.s32.totalorder %s21, 1
        %s196 = scalar_select %p195, %s21, 1
        %p197 = scmp.lt.s32.totalorder %s194, 1
        %s198 = scalar_select %p197, %s194, 1
        %s199 = smul.addr %s196, 2
        %s200 = sadd.s32 %s198, %s199
        %s201 = scalar_lea.vmem %s1, %s200
        %p202 = pneg %p80
        %p203 = pneg %p77
        %p204 = pneg %p101
        %p205 = pneg %p98
        %p206 = pneg %p129
        %p207 = pneg %p126
        %s208 = sand.u32 %s116, 1
        %s209 = scalar_lea.sflag [#allocation3], %s208
        %s210 = sand.u32 %s116, 1
        %s211 = smul.addr %s210, 4
        %s212 = scalar_lea.vmem [#allocation2], %s211
        %s213 = smul.u32 2, %s22
        %p214 = scmp.lt.s32.totalorder %s21, 1
        %s215 = scalar_select %p214, %s21, 1
        %p216 = scmp.lt.s32.totalorder %s213, 1
        %s217 = scalar_select %p216, %s213, 1
        %s218 = smul.addr %s215, 6
        %s219 = sadd.s32 %s217, %s218
        %s220 = smul.addr %s219, 8
        %s221 = scalar_lea.vmem %s0, %s220
        %s222 = smul.u32 2, %s22
        %s223 = smul.u32 2, %s22
        %p224 = scmp.lt.s32.totalorder %s21, 1
        %s225 = scalar_select %p224, %s21, 1
        %p226 = scmp.lt.s32.totalorder %s223, 1
        %s227 = scalar_select %p226, %s223, 1
        %s228 = smul.addr %s225, 2
        %s229 = sadd.s32 %s227, %s228
        %s230 = scalar_lea.vmem %s1, %s229
        %s231 = smul.u32 2, %s22
        %s232 = smul.u32 2, %s22
        %v233 = vld [vmem:[%s221] sm:$0xff]
        %v234 = vld [vmem:[%s221 + $0x8] sm:$0xff]
        %v235 = vld [vmem:[%s221 + $0x10] sm:$0xff]
        %v236 = vld [vmem:[%s221 + $0x18] sm:$0xff]
        %v237 = vld [vmem:[%s221 + $0x20] sm:$0x7]
        %v238 = vld [vmem:[%s221 + $0x28] sm:$0x7]
        %v239 = vld [vmem:[%s230] sm:$0x3]
        %v240 = vld [vmem:[%s2] sm:$0xff]
        %v241 = vld [vmem:[%s2 + $0x8] sm:$0xff]
        %v242 = vld [vmem:[%s2 + $0x10] sm:$0x7]
        %vm243 = vcmp.ne.s32.totalorder %v239, 4294967295
        %v244 = vsel %vm243, %v239, 0
        %vm245 = vcmask 1042432
        %v246 = vsel %vm245, %v237, -inf
        %v247 = vmax.f32 %v233, %v246
        %v248 = vmax.f32 %v247, %v235
        %v249 = vrot.slane %v248, 4
        %v250 = vmax.f32 %v248, %v249
        %v251 = vrot.slane %v250, 2
        %v252 = vmax.f32 %v250, %v251
        %v253 = vrot.slane %v252, 1
        %v254 = vmax.f32 %v252, %v253
        %v255 = vsel %vm245, %v238, -inf
        %v256 = vmax.f32 %v234, %v255
        %v257 = vmax.f32 %v256, %v236
        %v258 = vrot.slane %v257, 4
        %v259 = vmax.f32 %v257, %v258
        %v260 = vrot.slane %v259, 2
        %v261 = vmax.f32 %v259, %v260
        %v262 = vrot.slane %v261, 1
        %v263 = vmax.f32 %v261, %v262
        %v264 = vsub.f32 %v233, %v254
        %v265 = vsub.f32 %v234, %v263
        %v266 = vsub.f32 %v235, %v254
        %v267 = vsub.f32 %v236, %v263
        %v268 = vsub.f32 %v237, %v254
        %v269 = vsub.f32 %v238, %v263
        %v270 = vmul.f32 %v264, 1.442695
        %v271 = vpow.pop %v270
        %v272 = vmul.f32 %v265, 1.442695
        %v273 = vpow.pop %v272
        %v274 = vmul.f32 %v266, 1.442695
        %v275 = vpow.pop %v274
        %v276 = vmul.f32 %v267, 1.442695
        %v277 = vpow.pop %v276
        %v278 = vmul.f32 %v268, 1.442695
        %v279 = vpow.pop %v278
        %v280 = vmul.f32 %v269, 1.442695
        %v281 = vpow.pop %v280
        %v282 = vadd.f32 %v271, %v275
        %v283 = vsel %vm245, %v279, 0.0
        %v284 = vadd.f32 %v282, %v283
        %v285 = vrot.slane %v284, 4
        %v286 = vadd.f32 %v284, %v285
        %v287 = vrot.slane %v286, 2
        %v288 = vadd.f32 %v286, %v287
        %v289 = vrot.slane %v288, 1
        %v290 = vadd.f32 %v288, %v289
        %v291 = vadd.f32 %v273, %v277
        %v292 = vsel %vm245, %v281, 0.0
        %v293 = vadd.f32 %v291, %v292
        %v294 = vrot.slane %v293, 4
        %v295 = vadd.f32 %v293, %v294
        %v296 = vrot.slane %v295, 2
        %v297 = vadd.f32 %v295, %v296
        %v298 = vrot.slane %v297, 1
        %v299 = vadd.f32 %v297, %v298
        %v300 = vlog2.pop %v290
        %v301 = vmul.f32 %v300, 0.6931472
        %v302 = vlog2.pop %v299
        %v303 = vmul.f32 %v302, 0.6931472
        %v304 = vadd.f32 %v301, %v254
        %v305 = vadd.f32 %v303, %v263
        %v306 = vlaneseq
        %v307 = vshrl.u32 %v306, 7
        %v308 = vadd.s32 %v307, 8
        %v309 = vadd.s32 %v307, 16
        %v310 = vlaneseq
        %v311 = vshrl.u32 %v310, 7
        %v312 = vsub.s32 0, %v311
        %v313 = vrot.slane %v244, %v312
        %v314 = vlaneseq
        %v315 = vshrl.u32 %v314, 7
        %v316 = vsub.s32 1, %v315
        %v317 = vrot.slane %v244, %v316
        %vm318 = vcmp.eq.s32.totalorder %v307, %v313
        %vm319 = vcmp.eq.s32.totalorder %v307, %v317
        %vm320 = vcmp.eq.s32.totalorder %v308, %v313
        %vm321 = vcmp.eq.s32.totalorder %v308, %v317
        %vm322 = vcmp.eq.s32.totalorder %v309, %v313
        %vm323 = vcmp.eq.s32.totalorder %v309, %v317
        %v324 = vsel %vm318, %v233, 0.0
        %v325 = vsel %vm319, %v234, 0.0
        %v326 = vsel %vm320, %v235, 0.0
        %v327 = vsel %vm321, %v236, 0.0
        %v328 = vsel %vm322, %v237, 0.0
        %v329 = vsel %vm323, %v238, 0.0
        %v330 = vadd.f32 %v324, %v326
        %v331 = vsel %vm245, %v328, 0.0
        %v332 = vadd.f32 %v330, %v331
        %v333 = vrot.slane %v332, 4
        %v334 = vadd.f32 %v332, %v333
        %v335 = vrot.slane %v334, 2
        %v336 = vadd.f32 %v334, %v335
        %v337 = vrot.slane %v336, 1
        %v338 = vadd.f32 %v336, %v337
        %v339 = vadd.f32 %v325, %v327
        %v340 = vsel %vm245, %v329, 0.0
        %v341 = vadd.f32 %v339, %v340
        %v342 = vrot.slane %v341, 4
        %v343 = vadd.f32 %v341, %v342
        %v344 = vrot.slane %v343, 2
        %v345 = vadd.f32 %v343, %v344
        %v346 = vrot.slane %v345, 1
        %v347 = vadd.f32 %v345, %v346
        %349 = vset.pattern.permute.xlu0 0
        %350 = vperm.xlu0 %349, %v240
        %v351 = vpop.permute.xlu0 %350
        %354 = vset.pattern.permute.xlu0 0
        %355 = vperm.xlu0 %354, %v241
        %v356 = vpop.permute.xlu0 %355
        %359 = vset.pattern.permute.xlu0 0
        %360 = vperm.xlu0 %359, %v242
        %v361 = vpop.permute.xlu0 %360
        %v363 = vsel %vm318, %v351, 0.0
        %v364 = vsel %vm319, %v351, 0.0
        %v365 = vsel %vm320, %v356, 0.0
        %v366 = vsel %vm321, %v356, 0.0
        %v367 = vsel %vm322, %v361, 0.0
        %v368 = vsel %vm323, %v361, 0.0
        %v369 = vadd.f32 %v363, %v365
        %v370 = vsel %vm245, %v367, 0.0
        %v371 = vadd.f32 %v369, %v370
        %v372 = vrot.slane %v371, 4
        %v373 = vadd.f32 %v371, %v372
        %v374 = vrot.slane %v373, 2
        %v375 = vadd.f32 %v373, %v374
        %v376 = vrot.slane %v375, 1
        %v377 = vadd.f32 %v375, %v376
        %v378 = vadd.f32 %v364, %v366
        %v379 = vsel %vm245, %v368, 0.0
        %v380 = vadd.f32 %v378, %v379
        %v381 = vrot.slane %v380, 4
        %v382 = vadd.f32 %v380, %v381
        %v383 = vrot.slane %v382, 2
        %v384 = vadd.f32 %v382, %v383
        %v385 = vrot.slane %v384, 1
        %v386 = vadd.f32 %v384, %v385
        %v387 = vsub.f32 %v338, %v304
        %v388 = vsub.f32 %v347, %v305
        %v389 = vsel %vm243, 1, 0
        %v390 = vcvt.s32.f32 %v389
        %v391 = vsub.f32 0.0, %v377
        %v392 = vsub.f32 0.0, %v386
        %v393 = vmul.f32 %v391, %v387
        %v394 = vmul.f32 %v392, %v388
        %v397 = vcombine.low %v393, %v394
        %v399 = vunpack.c.l.s4 1966171168
        %v400 = vunpack.c.0.s8 %v399
        %v401 = vlaneseq
        %v402 = vshrl.u32 %v401, 7
        %v403 = vsub.s32 %v400, %v402
        %v404 = vrot.slane %v397, %v403
        %v406 = vunpack.c.l.s4 1966171168
        %v407 = vunpack.c.0.s8 %v406
        %v408 = vlaneseq
        %v409 = vshrl.u32 %v408, 7
        %v410 = vsub.s32 %v407, %v409
        %v411 = vrot.slane %v404, %v410
        %v413 = vmul.f32 %v390, %v411
        %v414 = vmul.f32 %v387, 1.442695
        %v415 = vpow.pop %v414
        %v416 = vmul.f32 %v388, 1.442695
        %v417 = vpow.pop %v416
        %v420 = vcombine.low %v415, %v417
        %v422 = vunpack.c.l.s4 1966171168
        %v423 = vunpack.c.0.s8 %v422
        %v424 = vlaneseq
        %v425 = vshrl.u32 %v424, 7
        %v426 = vsub.s32 %v423, %v425
        %v427 = vrot.slane %v420, %v426
        %v429 = vunpack.c.l.s4 1966171168
        %v430 = vunpack.c.0.s8 %v429
        %v431 = vlaneseq
        %v432 = vshrl.u32 %v431, 7
        %v433 = vsub.s32 %v430, %v432
        %v434 = vrot.slane %v427, %v433
        %v436 = vsel %vm243, %v434, 2.0
        %v437 = vlaneseq
        %vm438 = vcmp.ge.s32.totalorder %v437, 0
        %vm439 = vcmp.lt.s32.totalorder %v437, 256
        %vm440 = vmand %vm438, %vm439
        %441 = vst.msk [vmem:[%s212] ss:$2 sm:$0x3] %vm440, %v413
        %s442 = scalar_lea.vmem %s212, 1 [#allocation2]
        %443 = vst.msk [vmem:[%s442] ss:$2 sm:$0x3] %vm440, %v436
        %s444 = sand.u32 %s116, 1
        %s445 = scalar_lea.sflag [#allocation3], %s444
        %s446 = sand.u32 %s116, 1
        %s447 = smul.addr %s446, 4
        %s448 = scalar_lea.vmem [#allocation2], %s447
        // Predicated region
        $region33: #{tpu_custom_call.1} parent=31 // pred_check
          %p449 = pneg %p126
        $region34: #{tpu_custom_call.1} parent=31 // pred_check_branch
          %451 = sbr.rel (%p449) target = $region36
        $region35: #{tpu_custom_call.1} parent=31 // pred_region
          %s452 = smul.u32 2, %s22
          %s454 = ssub.s32 64, 64
          %455 = vsyncadd %s445, %s454
          %s456 = smul.addr %s21, 2
          %s457 = sadd.s32 %s452, %s456
          %s458 = smul.addr %s457, 32
          %s459 = scalar_lea.hbm %s3, %s458
          %s461 = sshll.u32 %s448, 4
          %s462 = int_to_ptr.vmem [resolvable:$true] %s461
          %464 = dma.vmem_to_hbm [thread:$0]  %s462, 64, %s459, %s445
        $region36: #{tpu_custom_call.1} parent=31 // pred_fallthru
          _
      $region32: #{tpu_custom_call.1} parent=5 // pred_fallthru
        _
      %p465 = scmp.le.s32.totalorder 2, %s12
      // Predicated region
      $region37: #{tpu_custom_call.1} parent=5 // pred_check
        %p466 = pneg %p465
      $region38: #{tpu_custom_call.1} parent=5 // pred_check_branch
        %468 = sbr.rel (%p466) target = $region40
      $region39: #{tpu_custom_call.1} parent=5 // pred_region
        %s469 = ssub.s32 %s12, 2
        // Predicated region
        $region41: #{tpu_custom_call.1} parent=39 // pred_check
          %p470 = pneg %p132
        $region42: #{tpu_custom_call.1} parent=39 // pred_check_branch
          %472 = sbr.rel (%p470) target = $region44
        $region43: #{tpu_custom_call.1} parent=39 // pred_region
          %s473 = sand.u32 %s117, 1
          %s474 = scalar_lea.sflag [#allocation3], %s473
          %s475 = sand.u32 %s117, 1
          %s476 = smul.addr %s475, 4
          %s477 = scalar_lea.vmem [#allocation2], %s476
          %478 = dma.done %s474, 64
        $region44: #{tpu_custom_call.1} parent=39 // pred_fallthru
          _
      $region40: #{tpu_custom_call.1} parent=5 // pred_fallthru
        _
    $region6: #{tpu_custom_call.1} parent=1 // loop_footer
      %s16 = sadd.s32 1, %s12
    $region7: #{tpu_custom_call.1} parent=1 // loop_footer_branch
      %11 = sbr.rel target = $region3
    $region8: #{tpu_custom_call.1} parent=1 // loop_exit
      _
    %479 = vsyncpa [#allocation3], 1
    %s480 = scalar_lea.sflag [#allocation3], 1
    %481 = vsyncpa %s480, 1

</llo_original>
